<compile_context>
chip_gen: v7x
topology: tpu7x:2x2x1
jax: 0.10.0
libtpu: 0.0.40
codegen_flags: <defaults>
</compile_context>

<pallas_src>
import jax
import jax.numpy as jnp
from jax.experimental import pallas as pl
from jax.experimental.pallas import tpu as pltpu


def edge_decoder_kernel(xT_ref, w1t_ref, b1_ref, w2t_ref, b2_ref, o_ref):
    # xT_ref : (d_in, TN)   tile of transposed input (N on lanes)
    # w1t_ref: (hid, d_in)  full W1^T
    # b1_ref : (hid, 1)     full b1 as a column (f32)
    # w2t_ref: (1, hid)     full W2^T row
    # b2_ref : (1,)         scalar bias in SMEM (f32)
    # o_ref  : (1, TN)      lane-dense output tile (f32)
    h = jnp.dot(w1t_ref[...], xT_ref[...], preferred_element_type=jnp.float32)
    h = jnp.maximum(h + b1_ref[...], 0.0)                   # bias + ReLU, f32
    o = jnp.dot(w2t_ref[...].astype(h.dtype), h,
                preferred_element_type=jnp.float32)
    o_ref[...] = o + b2_ref[0]


def _round_up(x, m):
    return ((x + m - 1) // m) * m


def _choose_tile(n, max_tile):
    """Lane tile: multiple of 128, as big as reasonable, but keep >=2 grid
    steps when possible so both TensorCores get work via the 'parallel' axis."""
    n128 = _round_up(max(n, 1), 128)
    if n128 <= 128:
        return 128
    return max(128, min(max_tile, _round_up(n128 // 2, 128)))


def edge_decoder(h, w1, b1, w2, b2, *, max_tile=2048, use_bf16=False):
    """h: (N, in_layers) -> (N,) float32, matching EdgeDecoder.forward.

    w1: (in_layers, hidden), b1: (hidden,), w2: (hidden, 1), b2: (1,)
    (i.e. weights are the transpose of torch.nn.Linear.weight).
    """
    n, d_in = h.shape
    hid = w1.shape[1]

    tile_n = _choose_tile(n, max_tile)
    n_pad = _round_up(n, tile_n)

    # Put N on the lane axis; pad the ragged tail (< tile_n rows) to a tile
    # multiple. Transpose + pad fuse into a single XLA copy in the wrapper.
    xT = jnp.pad(h, ((0, n_pad - n), (0, 0))).T             # (d_in, n_pad)
    w1T = w1.T                                               # (hid, d_in)
    w2T = w2.reshape(1, hid).astype(jnp.float32)             # (1, hid)
    b1c = b1.reshape(hid, 1).astype(jnp.float32)             # (hid, 1)
    b2s = b2.reshape(1).astype(jnp.float32)                  # (1,) -> SMEM

    if use_bf16:
        # Halve HBM bytes on the dominant stream; MXU still accumulates in f32
        # and the bias/ReLU path stays f32.
        xT = xT.astype(jnp.bfloat16)
        w1T = w1T.astype(jnp.bfloat16)

    grid = (n_pad // tile_n,)

    flops = 2 * n_pad * d_in * hid + 2 * n_pad * hid
    bytes_accessed = (
        xT.size * xT.dtype.itemsize           # input stream (dominant)
        + n_pad * 4                           # output stream
        + w1T.size * w1T.dtype.itemsize + hid * 4 + hid * 4 + 4
    )

    out = pl.pallas_call(
        edge_decoder_kernel,
        out_shape=jax.ShapeDtypeStruct((1, n_pad), jnp.float32),
        grid_spec=pltpu.PrefetchScalarGridSpec(
            num_scalar_prefetch=0,
            grid=grid,
            in_specs=[
                pl.BlockSpec((d_in, tile_n), lambda i: (0, i)),     # xT tile
                pl.BlockSpec((hid, d_in), lambda i: (0, 0)),        # W1^T
                pl.BlockSpec((hid, 1), lambda i: (0, 0)),           # b1 col
                pl.BlockSpec((1, hid), lambda i: (0, 0)),           # W2^T row
                pl.BlockSpec(memory_space=pltpu.MemorySpace.SMEM),  # b2 scalar
            ],
            out_specs=pl.BlockSpec((1, tile_n), lambda i: (0, i)),  # lane-dense
        ),
        compiler_params=pltpu.CompilerParams(
            dimension_semantics=("parallel",),
        ),
        cost_estimate=pl.CostEstimate(
            flops=flops, transcendentals=0, bytes_accessed=bytes_accessed),
    )(xT, w1T, b1c, w2T, b2s)

    return out.reshape(-1)[:n]  # .view(-1), padded columns dropped


def init_params(key, in_layers, hidden_layers):
    """Deterministic init mimicking torch.nn.Linear (uniform +/- 1/sqrt(fan_in))."""
    k1, k2, k3, k4 = jax.random.split(key, 4)
    bound1 = 1.0 / jnp.sqrt(in_layers)
    bound2 = 1.0 / jnp.sqrt(hidden_layers)
    w1 = jax.random.uniform(k1, (in_layers, hidden_layers), jnp.float32,
                            -bound1, bound1)
    b1 = jax.random.uniform(k2, (hidden_layers,), jnp.float32, -bound1, bound1)
    w2 = jax.random.uniform(k3, (hidden_layers, 1), jnp.float32,
                            -bound2, bound2)
    b2 = jax.random.uniform(k4, (1,), jnp.float32, -bound2, bound2)
    return w1, b1, w2, b2


if __name__ == "__main__":
    key = jax.random.PRNGKey(0)
    k_in, k_param = jax.random.split(key)

    N = 200          # number of edges; not a multiple of 128 -> exercises the
                     # padded tail and a 2-step grid (tile_n = 128)
    IN_LAYERS = 8
    HIDDEN = 32

    h = jax.random.normal(k_in, (N, IN_LAYERS), dtype=jnp.float32)
    w1, b1, w2, b2 = init_params(k_param, IN_LAYERS, HIDDEN)

    # Reference in plain JAX to sanity-check semantics.
    ref = (jnp.maximum(h @ w1 + b1, 0.0) @ w2 + b2).reshape(-1)

    # f32 path (exact).
    out = jax.block_until_ready(edge_decoder(h, w1, b1, w2, b2))
    assert out.shape == (N,)
    assert jnp.allclose(out, ref, atol=1e-5, rtol=1e-5)

    # bf16-input path (f32 accumulate), looser tolerance.
    out_bf16 = jax.block_until_ready(
        edge_decoder(h, w1, b1, w2, b2, use_bf16=True))
    assert out_bf16.shape == (N,)
    assert jnp.allclose(out_bf16, ref, atol=5e-2, rtol=5e-2)

    print("KERNEL_OK")
</pallas_src>

<mosaic_0001>
module attributes {stable_mosaic.version = 11 : i64} {
  func.func @edge_decoder_kernel(%arg0: i32, %arg1: memref<8x128xf32, #tpu.memory_space<vmem>>, %arg2: memref<32x8xf32, #tpu.memory_space<vmem>>, %arg3: memref<32x1xf32, #tpu.memory_space<vmem>>, %arg4: memref<1x32xf32, #tpu.memory_space<vmem>>, %arg5: memref<1xf32, #tpu.memory_space<smem>>, %arg6: memref<1x128xf32, #tpu.memory_space<vmem>>) attributes {dimension_semantics = [#tpu.dimension_semantics<parallel>], iteration_bounds = array<i64: 2>, scalar_prefetch = 0 : i64, scratch_operands = 0 : i64, tpu.core_type = #tpu.core_type<tc>, window_params = [{transform_indices = @transform_0, window_bounds = array<i64: 8, 128>}, {pipeline_mode = #tpu.pipeline_mode<synchronous>, transform_indices = @transform_1, window_bounds = array<i64: 32, 8>}, {pipeline_mode = #tpu.pipeline_mode<synchronous>, transform_indices = @transform_2, window_bounds = array<i64: 32, 1>}, {pipeline_mode = #tpu.pipeline_mode<synchronous>, transform_indices = @transform_3, window_bounds = array<i64: 1, 32>}, {transform_indices = @transform_4, window_bounds = array<i64: 1>}, {transform_indices = @transform_5, window_bounds = array<i64: 1, 128>}]} {
    %c0 = arith.constant 0 : index
    %c0_0 = arith.constant 0 : index
    %0 = vector.load %arg2[%c0, %c0_0] : memref<32x8xf32, #tpu.memory_space<vmem>>, vector<32x8xf32>
    %c0_1 = arith.constant 0 : index
    %c0_2 = arith.constant 0 : index
    %1 = vector.load %arg1[%c0_1, %c0_2] : memref<8x128xf32, #tpu.memory_space<vmem>>, vector<8x128xf32>
    %cst = arith.constant dense<0.000000e+00> : vector<32x128xf32>
    %2 = tpu.matmul %0, %1, %cst {dimension_numbers = #tpu.dot_dimension_numbers<[1], [0], [0], [1], [0, 0, 1, 1], [], []>} : vector<32x8xf32>, vector<8x128xf32>, vector<32x128xf32> -> vector<32x128xf32>
    %c0_3 = arith.constant 0 : index
    %c0_4 = arith.constant 0 : index
    %3 = vector.load %arg3[%c0_3, %c0_4] : memref<32x1xf32, #tpu.memory_space<vmem>>, vector<32x1xf32>
    %4 = vector.broadcast %3 : vector<32x1xf32> to vector<32x128xf32>
    %5 = arith.addf %2, %4 : vector<32x128xf32>
    %cst_5 = arith.constant 0.000000e+00 : f32
    %6 = vector.broadcast %cst_5 : f32 to vector<32x128xf32>
    %7 = arith.maximumf %5, %6 : vector<32x128xf32>
    %c0_6 = arith.constant 0 : index
    %c0_7 = arith.constant 0 : index
    %8 = vector.load %arg4[%c0_6, %c0_7] : memref<1x32xf32, #tpu.memory_space<vmem>>, vector<1x32xf32>
    %cst_8 = arith.constant dense<0.000000e+00> : vector<1x128xf32>
    %9 = tpu.matmul %8, %7, %cst_8 {dimension_numbers = #tpu.dot_dimension_numbers<[1], [0], [0], [1], [0, 0, 1, 1], [], []>} : vector<1x32xf32>, vector<32x128xf32>, vector<1x128xf32> -> vector<1x128xf32>
    %c0_9 = arith.constant 0 : index
    %10 = memref.load %arg5[%c0_9] : memref<1xf32, #tpu.memory_space<smem>>
    %11 = vector.broadcast %10 : f32 to vector<1x128xf32>
    %12 = arith.addf %9, %11 : vector<1x128xf32>
    %c0_10 = arith.constant 0 : index
    %c0_11 = arith.constant 0 : index
    %13 = vector.load %arg6[%c0_10, %c0_11] : memref<1x128xf32, #tpu.memory_space<vmem>>, vector<1x128xf32>
    tpu.vector_store %arg6[%c0_10, %c0_11], %12 {strides = array<i32>} : memref<1x128xf32, #tpu.memory_space<vmem>>, vector<1x128xf32>,
    return
  }
  func.func @transform_0(%arg0: i32) -> (i32, i32) {
    %c0_i32 = arith.constant 0 : i32
    %c0_i32_0 = arith.constant 0 : i32
    return %c0_i32, %arg0 : i32, i32
  }
  func.func @transform_1(%arg0: i32) -> (i32, i32) {
    %c0_i32 = arith.constant 0 : i32
    %c0_i32_0 = arith.constant 0 : i32
    %c0_i32_1 = arith.constant 0 : i32
    return %c0_i32, %c0_i32_0 : i32, i32
  }
  func.func @transform_2(%arg0: i32) -> (i32, i32) {
    %c0_i32 = arith.constant 0 : i32
    %c0_i32_0 = arith.constant 0 : i32
    %c0_i32_1 = arith.constant 0 : i32
    return %c0_i32, %c0_i32_0 : i32, i32
  }
  func.func @transform_3(%arg0: i32) -> (i32, i32) {
    %c0_i32 = arith.constant 0 : i32
    %c0_i32_0 = arith.constant 0 : i32
    %c0_i32_1 = arith.constant 0 : i32
    return %c0_i32, %c0_i32_0 : i32, i32
  }
  func.func @transform_4(%arg0: i32) -> i32 {
    %c0_i32 = arith.constant 0 : i32
    %c0_i32_0 = arith.constant 0 : i32
    return %c0_i32 : i32
  }
  func.func @transform_5(%arg0: i32) -> (i32, i32) {
    %c0_i32 = arith.constant 0 : i32
    %c0_i32_0 = arith.constant 0 : i32
    return %c0_i32, %arg0 : i32, i32
  }
}

</mosaic_0001>

<llo_original>
// kernel: tpu_custom_call.1
$region0: #{tpu_custom_call.1}
  #allocation0 [shape = 'u32[]', space=smem, size = 0x4, offset = 0x4, fixed_abs, tag = 'smem constant byte address 0x4 - core index']
  #allocation1 [shape = 'u32[144,128]{1,0:T(1,128)}', space=vmem, size = 0x12000, scoped, tag = 'internal scratch']
  #allocation2 [shape = 'f32[1]{0:T(128)S(6)}', space=smem, size = 0x200, scoped, tag = 'scoped memory for tpu_custom_call.1']
  %s0 = inlined_call_operand.vmem [shape: f32[8,256], index: 0, kind: input, shape index: {}]
  %s1 = inlined_call_operand.vmem [shape: f32[32,8], index: 1, kind: input, shape index: {}]
  %s2 = inlined_call_operand.vmem [shape: f32[32,1], index: 2, kind: input, shape index: {}]
  %s3 = inlined_call_operand.vmem [shape: f32[1,32], index: 3, kind: input, shape index: {}]
  %s4 = inlined_call_operand.<no memory space> [shape: f32[1], index: 4, kind: input, shape index: {}]
  %s5 = inlined_call_operand.hbm [shape: f32[1,256], index: 5, kind: output, shape index: {}]
  %s6 = sld [smem:[#allocation0]]
  $region53: #{tpu_custom_call.1} parent=0
    _
  %s8 = ssub.s32 1, %s6
  %s9 = scalar_select 0, %s8, %s6
  %10 = sst [smem:[#allocation2]] %s4
  $region1: #{tpu_custom_call.1} parent=0
    #allocation3 [shape = 'u8[1024]{0}', space=vmem, size = 0x400, scoped, tag = 'output window, operand 0']
    #allocation4 [shape = 's32[2]{0}', space=sflag, size = 0x8, scoped, tag = 'scoped memory for tpu_custom_call.1']
    %11 = vsyncpa [#allocation4], 0
    %s12 = scalar_lea.sflag [#allocation4], 1
    %13 = vsyncpa %s12, 0
    loop: start=0, step=1, limit=4
    $region2: #{tpu_custom_call.1} parent=1 // loop_pre_header
      _
    $region3: #{tpu_custom_call.1} parent=1 // loop_header
      %s15 = sphi 0, %s19
      %p16 = scmp.ge.s32.totalorder %s15, 4
      %s25 = sphi 0, %s27
      %s28 = sphi 0, %s25
      %s29 = sphi 0, %s28
      %s45 = sphi 0, %s29
      %s49 = sphi 0, %s49
      %s51 = sphi 0, %s49
      %s52 = sphi 0, %s51
      %s66 = sphi 0, %s52
      %s70 = sphi 0, %s70
      %s72 = sphi 0, %s70
      %s73 = sphi 0, %s72
      %s87 = sphi 0, %s73
      %s91 = sphi 0, %s91
      %s93 = sphi 0, %s91
      %s94 = sphi 0, %s93
      %s108 = sphi 0, %s94
      %s112 = sphi 0, %s112
      %s114 = sphi 0, %s112
      %s115 = sphi 0, %s114
      %s129 = sphi 0, %s115
      %s135 = sphi 0, %s137
      %s138 = sphi 0, %s135
      %s139 = sphi 0, %s138
      %s155 = sphi 0, %s139
    $region4: #{tpu_custom_call.1} parent=1 // loop_header_branch
      %18 = sbr.rel (%p16) target = $region8
    $region5: #{tpu_custom_call.1} parent=1 // loop_body
      %s20 = ssub.s32 %s15, 1
      %s21 = ssub.s32 %s15, 2
      %s22 = sadd.s32 %s15, 1
      %s23 = ssub.s32 %s15, %s22
      %p24 = scmp.eq.s32.totalorder %s23, 0
      %s26 = sadd.s32 %s25, 1
      %s27 = scalar_select %p24, %s25, %s26
      %p30 = pneg %p24
      %p31 = scmp.eq.s32.totalorder %s15, 1
      %p32 = por %p30, %p31
      %p33 = scmp.ne.s32.totalorder %s25, %s28
      %p34 = scmp.eq.s32.totalorder %s15, 0
      %p35 = por %p33, %p34
      %p36 = scmp.ne.s32.totalorder %s25, %s28
      %p37 = scmp.eq.s32.totalorder %s20, 1
      %p38 = por %p36, %p37
      %p39 = scmp.ne.s32.totalorder %s28, %s29
      %p40 = scmp.eq.s32.totalorder %s20, 0
      %p41 = por %p39, %p40
      %p42 = scmp.ne.s32.totalorder %s28, %s29
      %p43 = scmp.eq.s32.totalorder %s21, 1
      %p44 = por %p42, %p43
      %p46 = scmp.ne.s32.totalorder %s29, %s45
      %p47 = scmp.eq.s32.totalorder %s21, 0
      %p48 = por %p46, %p47
      %s50 = sadd.s32 %s49, 1
      %p53 = scmp.eq.s32.totalorder %s15, 1
      %p54 = scmp.ne.s32.totalorder %s49, %s51
      %p55 = scmp.eq.s32.totalorder %s15, 0
      %p56 = por %p54, %p55
      %p57 = scmp.ne.s32.totalorder %s49, %s51
      %p58 = scmp.eq.s32.totalorder %s20, 1
      %p59 = por %p57, %p58
      %p60 = scmp.ne.s32.totalorder %s51, %s52
      %p61 = scmp.eq.s32.totalorder %s20, 0
      %p62 = por %p60, %p61
      %p63 = scmp.ne.s32.totalorder %s51, %s52
      %p64 = scmp.eq.s32.totalorder %s21, 1
      %p65 = por %p63, %p64
      %p67 = scmp.ne.s32.totalorder %s52, %s66
      %p68 = scmp.eq.s32.totalorder %s21, 0
      %p69 = por %p67, %p68
      %s71 = sadd.s32 %s70, 1
      %p74 = scmp.eq.s32.totalorder %s15, 1
      %p75 = scmp.ne.s32.totalorder %s70, %s72
      %p76 = scmp.eq.s32.totalorder %s15, 0
      %p77 = por %p75, %p76
      %p78 = scmp.ne.s32.totalorder %s70, %s72
      %p79 = scmp.eq.s32.totalorder %s20, 1
      %p80 = por %p78, %p79
      %p81 = scmp.ne.s32.totalorder %s72, %s73
      %p82 = scmp.eq.s32.totalorder %s20, 0
      %p83 = por %p81, %p82
      %p84 = scmp.ne.s32.totalorder %s72, %s73
      %p85 = scmp.eq.s32.totalorder %s21, 1
      %p86 = por %p84, %p85
      %p88 = scmp.ne.s32.totalorder %s73, %s87
      %p89 = scmp.eq.s32.totalorder %s21, 0
      %p90 = por %p88, %p89
      %s92 = sadd.s32 %s91, 1
      %p95 = scmp.eq.s32.totalorder %s15, 1
      %p96 = scmp.ne.s32.totalorder %s91, %s93
      %p97 = scmp.eq.s32.totalorder %s15, 0
      %p98 = por %p96, %p97
      %p99 = scmp.ne.s32.totalorder %s91, %s93
      %p100 = scmp.eq.s32.totalorder %s20, 1
      %p101 = por %p99, %p100
      %p102 = scmp.ne.s32.totalorder %s93, %s94
      %p103 = scmp.eq.s32.totalorder %s20, 0
      %p104 = por %p102, %p103
      %p105 = scmp.ne.s32.totalorder %s93, %s94
      %p106 = scmp.eq.s32.totalorder %s21, 1
      %p107 = por %p105, %p106
      %p109 = scmp.ne.s32.totalorder %s94, %s108
      %p110 = scmp.eq.s32.totalorder %s21, 0
      %p111 = por %p109, %p110
      %s113 = sadd.s32 %s112, 1
      %p116 = scmp.eq.s32.totalorder %s15, 1
      %p117 = scmp.ne.s32.totalorder %s112, %s114
      %p118 = scmp.eq.s32.totalorder %s15, 0
      %p119 = por %p117, %p118
      %p120 = scmp.ne.s32.totalorder %s112, %s114
      %p121 = scmp.eq.s32.totalorder %s20, 1
      %p122 = por %p120, %p121
      %p123 = scmp.ne.s32.totalorder %s114, %s115
      %p124 = scmp.eq.s32.totalorder %s20, 0
      %p125 = por %p123, %p124
      %p126 = scmp.ne.s32.totalorder %s114, %s115
      %p127 = scmp.eq.s32.totalorder %s21, 1
      %p128 = por %p126, %p127
      %p130 = scmp.ne.s32.totalorder %s115, %s129
      %p131 = scmp.eq.s32.totalorder %s21, 0
      %p132 = por %p130, %p131
      %s133 = ssub.s32 %s15, %s22
      %p134 = scmp.eq.s32.totalorder %s133, 0
      %s136 = sadd.s32 %s135, 1
      %s137 = scalar_select %p134, %s135, %s136
      %p140 = pneg %p134
      %p141 = scmp.eq.s32.totalorder %s15, 1
      %p142 = por %p140, %p141
      %p143 = scmp.ne.s32.totalorder %s135, %s138
      %p144 = scmp.eq.s32.totalorder %s15, 0
      %p145 = por %p143, %p144
      %p146 = scmp.ne.s32.totalorder %s135, %s138
      %p147 = scmp.eq.s32.totalorder %s20, 1
      %p148 = por %p146, %p147
      %p149 = scmp.ne.s32.totalorder %s138, %s139
      %p150 = scmp.eq.s32.totalorder %s20, 0
      %p151 = por %p149, %p150
      %p152 = scmp.ne.s32.totalorder %s138, %s139
      %p153 = scmp.eq.s32.totalorder %s21, 1
      %p154 = por %p152, %p153
      %p156 = scmp.ne.s32.totalorder %s139, %s155
      %p157 = scmp.eq.s32.totalorder %s21, 0
      %p158 = por %p156, %p157
      %p159 = scmp.le.s32.totalorder 1, %s15
      %p160 = scmp.lt.s32.totalorder %s15, 3
      %p161 = pnand %p159, %p160
      %p162 = pneg %p161
      // Predicated region
      $region9: #{tpu_custom_call.1} parent=5 // pred_check
        _
      $region10: #{tpu_custom_call.1} parent=5 // pred_check_branch
        %164 = sbr.rel (%p161) target = $region12
      $region11: #{tpu_custom_call.1} parent=5 // pred_region
        %s165 = ssub.s32 %s15, 1
        // Predicated region
        $region13: #{tpu_custom_call.1} parent=11 // pred_check
          %p166 = pneg %p62
        $region14: #{tpu_custom_call.1} parent=11 // pred_check_branch
          %168 = sbr.rel (%p166) target = $region16
        $region15: #{tpu_custom_call.1} parent=11 // pred_region
          _
        $region16: #{tpu_custom_call.1} parent=11 // pred_fallthru
          _
        // Predicated region
        $region17: #{tpu_custom_call.1} parent=11 // pred_check
          %p169 = pneg %p83
        $region18: #{tpu_custom_call.1} parent=11 // pred_check_branch
          %171 = sbr.rel (%p169) target = $region20
        $region19: #{tpu_custom_call.1} parent=11 // pred_region
          _
        $region20: #{tpu_custom_call.1} parent=11 // pred_fallthru
          _
        // Predicated region
        $region21: #{tpu_custom_call.1} parent=11 // pred_check
          %p172 = pneg %p104
        $region22: #{tpu_custom_call.1} parent=11 // pred_check_branch
          %174 = sbr.rel (%p172) target = $region24
        $region23: #{tpu_custom_call.1} parent=11 // pred_region
          _
        $region24: #{tpu_custom_call.1} parent=11 // pred_fallthru
          _
        // Predicated region
        $region25: #{tpu_custom_call.1} parent=11 // pred_check
          %p175 = pneg %p125
        $region26: #{tpu_custom_call.1} parent=11 // pred_check_branch
          %177 = sbr.rel (%p175) target = $region28
        $region27: #{tpu_custom_call.1} parent=11 // pred_region
          _
        $region28: #{tpu_custom_call.1} parent=11 // pred_fallthru
          _
      $region12: #{tpu_custom_call.1} parent=5 // pred_fallthru
        _
      %p178 = scmp.lt.s32.totalorder %s15, 2
      // Predicated region
      $region29: #{tpu_custom_call.1} parent=5 // pred_check
        %p179 = pneg %p178
      $region30: #{tpu_custom_call.1} parent=5 // pred_check_branch
        %181 = sbr.rel (%p179) target = $region32
      $region31: #{tpu_custom_call.1} parent=5 // pred_region
        // Predicated region
        $region33: #{tpu_custom_call.1} parent=31 // pred_check
          %p182 = pneg %p35
        $region34: #{tpu_custom_call.1} parent=31 // pred_check_branch
          %184 = sbr.rel (%p182) target = $region36
        $region35: #{tpu_custom_call.1} parent=31 // pred_region
          %p185 = scmp.lt.s32.totalorder %s15, 1
          %s186 = scalar_select %p185, %s15, 1
          %s187 = smul.addr %s186, 8
          %s188 = scalar_lea.vmem %s0, %s187
        $region36: #{tpu_custom_call.1} parent=31 // pred_fallthru
          _
      $region32: #{tpu_custom_call.1} parent=5 // pred_fallthru
        _
      %p189 = scmp.le.s32.totalorder 1, %s15
      %p190 = scmp.lt.s32.totalorder %s15, 3
      %p191 = pnand %p189, %p190
      %p192 = pneg %p191
      // Predicated region
      $region37: #{tpu_custom_call.1} parent=5 // pred_check
        _
      $region38: #{tpu_custom_call.1} parent=5 // pred_check_branch
        %194 = sbr.rel (%p191) target = $region40
      $region39: #{tpu_custom_call.1} parent=5 // pred_region
        %s195 = ssub.s32 %s15, 1
        %p196 = scmp.lt.s32.totalorder %s20, 1
        %s197 = scalar_select %p196, %s20, 1
        %s198 = smul.addr %s197, 8
        %s199 = scalar_lea.vmem %s0, %s198
        %p200 = pneg %p41
        %p201 = pneg %p38
        %p202 = pneg %p62
        %p203 = pneg %p59
        %p204 = pneg %p83
        %p205 = pneg %p80
        %p206 = pneg %p104
        %p207 = pneg %p101
        %p208 = pneg %p125
        %p209 = pneg %p122
        %p210 = pneg %p151
        %p211 = pneg %p148
        %s212 = sand.u32 %s138, 1
        %s213 = scalar_lea.sflag [#allocation4], %s212
        %s214 = sand.u32 %s138, 1
        %s215 = scalar_lea.vmem [#allocation3], %s214
        %p216 = scmp.lt.s32.totalorder %s20, 1
        %s217 = scalar_select %p216, %s20, 1
        %s218 = smul.addr %s217, 8
        %s219 = scalar_lea.vmem %s0, %s218
        %v220 = vld [vmem:[%s1] sm:$0xff]
        %v221 = vld [vmem:[%s1 + $0x8] sm:$0xff]
        %v222 = vld [vmem:[%s1 + $0x10] sm:$0xff]
        %v223 = vld [vmem:[%s1 + $0x18] sm:$0xff]
        %v224 = vld [vmem:[%s219] sm:$0xff]
        %v225 = vld [vmem:[%s2] sm:$0xff]
        %v226 = vld [vmem:[%s2 + $0x8] sm:$0xff]
        %v227 = vld [vmem:[%s2 + $0x10] sm:$0xff]
        %v228 = vld [vmem:[%s2 + $0x18] sm:$0xff]
        %230 = vset.pattern.permute.xlu0 0
        %231 = vperm.xlu0 %230, %v225
        %v232 = vpop.permute.xlu0 %231
        %235 = vset.pattern.permute.xlu0 0
        %236 = vperm.xlu0 %235, %v226
        %v237 = vpop.permute.xlu0 %236
        %240 = vset.pattern.permute.xlu0 0
        %241 = vperm.xlu0 %240, %v227
        %v242 = vpop.permute.xlu0 %241
        %245 = vset.pattern.permute.xlu0 0
        %246 = vperm.xlu0 %245, %v228
        %v247 = vpop.permute.xlu0 %246
        %vm249 = vcmask 64512
        %v251 = vsel %vm249, %v220, 0
        %v254 = vsel %vm249, %v221, 0
        %v257 = vsel %vm249, %v222, 0
        %v260 = vsel %vm249, %v223, 0
        %262 = vmatprep.subr.mxu0 0.0
        %263 = vmatpush1.msra.mxu0 %v224
        %264 = vmatprep.subr.mxu0 0.0
        %265 = vmatpush1.msra.mxu0 0.0
        %266 = vmatprep.subr.mxu0 0.0
        %267 = vmatpush1.msra.mxu0 0.0
        %268 = vmatprep.subr.mxu0 0.0
        %269 = vmatpush1.msra.mxu0 0.0
        %270 = vmatprep.subr.mxu0 0.0
        %271 = vmatpush1.msra.mxu0 0.0
        %272 = vmatprep.subr.mxu0 0.0
        %273 = vmatpush1.msra.mxu0 0.0
        %274 = vmatprep.subr.mxu0 0.0
        %275 = vmatpush1.msra.mxu0 0.0
        %276 = vmatprep.subr.mxu0 0.0
        %277 = vmatpush1.msra.mxu0 0.0
        %278 = vmatprep.subr.mxu0 0.0
        %279 = vmatpush1.msra.mxu0 0.0
        %280 = vmatprep.subr.mxu0 0.0
        %281 = vmatpush1.msra.mxu0 0.0
        %282 = vmatprep.subr.mxu0 0.0
        %283 = vmatpush1.msra.mxu0 0.0
        %284 = vmatprep.subr.mxu0 0.0
        %285 = vmatpush1.msra.mxu0 0.0
        %286 = vmatprep.subr.mxu0 0.0
        %287 = vmatpush1.msra.mxu0 0.0
        %288 = vmatprep.subr.mxu0 0.0
        %289 = vmatpush1.msra.mxu0 0.0
        %290 = vmatprep.subr.mxu0 0.0
        %291 = vmatpush1.msra.mxu0 0.0
        %292 = vmatprep.subr.mxu0 0.0
        %293 = vmatpush1.msra.mxu0 0.0
        %294 = vmatprep.subr.mxu0 0.0
        %295 = vmatpush1.msra.mxu0 0.0
        %296 = vmatprep.subr.mxu0 0.0
        %297 = vmatpush1.msra.mxu0 0.0
        %298 = vmatprep.subr.mxu0 0.0
        %299 = vmatpush1.msra.mxu0 0.0
        %300 = vmatprep.subr.mxu0 0.0
        %301 = vmatpush1.msra.mxu0 0.0
        %302 = vmatprep.subr.mxu0 0.0
        %303 = vmatpush1.msra.mxu0 0.0
        %304 = vmatprep.subr.mxu0 0.0
        %305 = vmatpush1.msra.mxu0 0.0
        %306 = vmatprep.subr.mxu0 0.0
        %307 = vmatpush1.msra.mxu0 0.0
        %308 = vmatprep.subr.mxu0 0.0
        %309 = vmatpush1.msra.mxu0 0.0
        %310 = vmatprep.subr.mxu0 0.0
        %311 = vmatpush1.msra.mxu0 0.0
        %312 = vmatprep.subr.mxu0 0.0
        %313 = vmatpush1.msra.mxu0 0.0
        %314 = vmatprep.subr.mxu0 0.0
        %315 = vmatpush1.msra.mxu0 0.0
        %316 = vmatprep.subr.mxu0 0.0
        %317 = vmatpush1.msra.mxu0 0.0
        %318 = vmatprep.subr.mxu0 0.0
        %319 = vmatpush1.msra.mxu0 0.0
        %320 = vmatprep.subr.mxu0 0.0
        %321 = vmatpush1.msra.mxu0 0.0
        %322 = vmatprep.subr.mxu0 0.0
        %323 = vmatpush1.msra.mxu0 0.0
        %324 = vmatprep.subr.mxu0 0.0
        %325 = vmatpush1.msra.mxu0 0.0
        %326 = vmatprep.mubr.f32.mxu0 0.0
        %327 = vmatmul.mubr.f32.gmra.mrb[0].mxu0 %v251
        %v328 = vpop.f32.mrb[0].mxu0
        %v329 = vadd.f32 %v232, %v328
        %v330 = vpop.f32.mrb[0].mxu0
        %331 = vmatprep.mubr.f32.mxu0 0.0
        %332 = vmatmul.mubr.f32.gmra.mrb[0].mxu0 %v254
        %v333 = vpop.f32.mrb[0].mxu0
        %v334 = vadd.f32 %v237, %v333
        %v335 = vpop.f32.mrb[0].mxu0
        %336 = vmatprep.mubr.f32.mxu0 0.0
        %337 = vmatmul.mubr.f32.gmra.mrb[0].mxu0 %v257
        %v338 = vpop.f32.mrb[0].mxu0
        %v339 = vadd.f32 %v242, %v338
        %v340 = vpop.f32.mrb[0].mxu0
        %341 = vmatprep.mubr.f32.mxu0 0.0
        %342 = vmatmul.mubr.f32.gmra.mrb[0].mxu0 %v260
        %v343 = vpop.f32.mrb[0].mxu0
        %v344 = vadd.f32 %v247, %v343
        %v345 = vpop.f32.mrb[0].mxu0
        %346 = vdwg.mxu0
        %v347 = vmax.f32 %v329, 0.0
        %v348 = vmax.f32 %v334, 0.0
        %v349 = vmax.f32 %v339, 0.0
        %v350 = vmax.f32 %v344, 0.0
        %v351 = vld [vmem:[%s3] sm:$0x1]
        %s352 = sld [smem:[#allocation2]]
        %v353 = vstv %s352
        %vm354 = vcmask 261120
        %v356 = vsel %vm354, %v351, 0
        %358 = vmatprep.subr.mxu0 0.0
        %359 = vmatpush1.msra.mxu0 %v347
        %360 = vmatprep.subr.mxu0 0.0
        %361 = vmatpush1.msra.mxu0 %v348
        %362 = vmatprep.subr.mxu0 0.0
        %363 = vmatpush1.msra.mxu0 %v349
        %364 = vmatprep.subr.mxu0 0.0
        %365 = vmatpush1.msra.mxu0 %v350
        %366 = vmatprep.subr.mxu0 0.0
        %367 = vmatpush1.msra.mxu0 0.0
        %368 = vmatprep.subr.mxu0 0.0
        %369 = vmatpush1.msra.mxu0 0.0
        %370 = vmatprep.subr.mxu0 0.0
        %371 = vmatpush1.msra.mxu0 0.0
        %372 = vmatprep.subr.mxu0 0.0
        %373 = vmatpush1.msra.mxu0 0.0
        %374 = vmatprep.subr.mxu0 0.0
        %375 = vmatpush1.msra.mxu0 0.0
        %376 = vmatprep.subr.mxu0 0.0
        %377 = vmatpush1.msra.mxu0 0.0
        %378 = vmatprep.subr.mxu0 0.0
        %379 = vmatpush1.msra.mxu0 0.0
        %380 = vmatprep.subr.mxu0 0.0
        %381 = vmatpush1.msra.mxu0 0.0
        %382 = vmatprep.subr.mxu0 0.0
        %383 = vmatpush1.msra.mxu0 0.0
        %384 = vmatprep.subr.mxu0 0.0
        %385 = vmatpush1.msra.mxu0 0.0
        %386 = vmatprep.subr.mxu0 0.0
        %387 = vmatpush1.msra.mxu0 0.0
        %388 = vmatprep.subr.mxu0 0.0
        %389 = vmatpush1.msra.mxu0 0.0
        %390 = vmatprep.subr.mxu0 0.0
        %391 = vmatpush1.msra.mxu0 0.0
        %392 = vmatprep.subr.mxu0 0.0
        %393 = vmatpush1.msra.mxu0 0.0
        %394 = vmatprep.subr.mxu0 0.0
        %395 = vmatpush1.msra.mxu0 0.0
        %396 = vmatprep.subr.mxu0 0.0
        %397 = vmatpush1.msra.mxu0 0.0
        %398 = vmatprep.subr.mxu0 0.0
        %399 = vmatpush1.msra.mxu0 0.0
        %400 = vmatprep.subr.mxu0 0.0
        %401 = vmatpush1.msra.mxu0 0.0
        %402 = vmatprep.subr.mxu0 0.0
        %403 = vmatpush1.msra.mxu0 0.0
        %404 = vmatprep.subr.mxu0 0.0
        %405 = vmatpush1.msra.mxu0 0.0
        %406 = vmatprep.subr.mxu0 0.0
        %407 = vmatpush1.msra.mxu0 0.0
        %408 = vmatprep.subr.mxu0 0.0
        %409 = vmatpush1.msra.mxu0 0.0
        %410 = vmatprep.subr.mxu0 0.0
        %411 = vmatpush1.msra.mxu0 0.0
        %412 = vmatprep.subr.mxu0 0.0
        %413 = vmatpush1.msra.mxu0 0.0
        %414 = vmatprep.subr.mxu0 0.0
        %415 = vmatpush1.msra.mxu0 0.0
        %416 = vmatprep.subr.mxu0 0.0
        %417 = vmatpush1.msra.mxu0 0.0
        %418 = vmatprep.subr.mxu0 0.0
        %419 = vmatpush1.msra.mxu0 0.0
        %420 = vmatprep.subr.mxu0 0.0
        %421 = vmatpush1.msra.mxu0 0.0
        %422 = vmatprep.mubr.f32.mxu0 0.0
        %423 = vmatmul.mubr.f32.gmra.mrb[0].mxu0 %v356
        %v424 = vpop.f32.mrb[0].mxu0
        %v425 = vadd.f32 %v353, %v424
        %v426 = vpop.f32.mrb[0].mxu0
        %427 = vdwg.mxu0
        %428 = vst [vmem:[%s215] sm:$0x1] %v425
        %s429 = sand.u32 %s138, 1
        %s430 = scalar_lea.sflag [#allocation4], %s429
        %s431 = sand.u32 %s138, 1
        %s432 = scalar_lea.vmem [#allocation3], %s431
        // Predicated region
        $region41: #{tpu_custom_call.1} parent=39 // pred_check
          %p433 = pneg %p148
        $region42: #{tpu_custom_call.1} parent=39 // pred_check_branch
          %435 = sbr.rel (%p433) target = $region44
        $region43: #{tpu_custom_call.1} parent=39 // pred_region
          %s437 = ssub.s32 16, 16
          %438 = vsyncadd %s430, %s437
          %s439 = smul.addr %s20, 16
          %s440 = scalar_lea.hbm %s5, %s439
          %s442 = sshll.u32 %s432, 4
          %s443 = int_to_ptr.vmem [resolvable:$true] %s442
          %445 = dma.vmem_to_hbm [thread:$0]  %s443, 16, %s440, %s430
        $region44: #{tpu_custom_call.1} parent=39 // pred_fallthru
          _
      $region40: #{tpu_custom_call.1} parent=5 // pred_fallthru
        _
      %p446 = scmp.le.s32.totalorder 2, %s15
      // Predicated region
      $region45: #{tpu_custom_call.1} parent=5 // pred_check
        %p447 = pneg %p446
      $region46: #{tpu_custom_call.1} parent=5 // pred_check_branch
        %449 = sbr.rel (%p447) target = $region48
      $region47: #{tpu_custom_call.1} parent=5 // pred_region
        %s450 = ssub.s32 %s15, 2
        // Predicated region
        $region49: #{tpu_custom_call.1} parent=47 // pred_check
          %p451 = pneg %p154
        $region50: #{tpu_custom_call.1} parent=47 // pred_check_branch
          %453 = sbr.rel (%p451) target = $region52
        $region51: #{tpu_custom_call.1} parent=47 // pred_region
          %s454 = sand.u32 %s139, 1
          %s455 = scalar_lea.sflag [#allocation4], %s454
          %s456 = sand.u32 %s139, 1
          %s457 = scalar_lea.vmem [#allocation3], %s456
          %458 = dma.done %s455, 16
        $region52: #{tpu_custom_call.1} parent=47 // pred_fallthru
          _
      $region48: #{tpu_custom_call.1} parent=5 // pred_fallthru
        _
    $region6: #{tpu_custom_call.1} parent=1 // loop_footer
      %s19 = sadd.s32 1, %s15
    $region7: #{tpu_custom_call.1} parent=1 // loop_footer_branch
      %14 = sbr.rel target = $region3
    $region8: #{tpu_custom_call.1} parent=1 // loop_exit
      _
    %459 = vsyncpa [#allocation4], 1
    %s460 = scalar_lea.sflag [#allocation4], 1
    %461 = vsyncpa %s460, 1

</llo_original>
